<compile_context>
chip_gen: v7x
topology: tpu7x:2x2x1
jax: 0.10.0
libtpu: 0.0.40
codegen_flags: <defaults>
</compile_context>

<pallas_src>
import jax
import jax.numpy as jnp
from jax.experimental import pallas as pl
from jax.experimental.pallas import tpu as pltpu  # noqa: F401  (kept for TPU-specific tuning hooks)


def _lstm_dynamics_kernel(x_ref, h_ref, c_ref, m_ref,
                          wx_ref, wh_ref, b_ref,
                          h_out_ref, c_out_ref):
    x = x_ref[...]          # (B, K*I)
    h = h_ref[...]          # (B, K*H)
    c = c_ref[...]          # (B, K*H)
    m = m_ref[...]          # (B, K*H)

    # One fused pre-activation: (B, 4*K*H), gate-major layout [f | i | o | c].
    acts = (jnp.dot(x, wx_ref[...], preferred_element_type=jnp.float32)
            + jnp.dot(h, wh_ref[...], preferred_element_type=jnp.float32)
            + b_ref[...])

    kh = h.shape[-1]        # K*H (lane-aligned multiple of 128 at test shapes)
    f = jax.nn.sigmoid(acts[:, 0 * kh:1 * kh])
    i = jax.nn.sigmoid(acts[:, 1 * kh:2 * kh])
    o = jax.nn.sigmoid(acts[:, 2 * kh:3 * kh])
    g = jnp.tanh(acts[:, 3 * kh:4 * kh])

    c_new = f * c + i * jnp.tanh(g)          # double tanh matches the reference
    new_h = o * jnp.tanh(c_new)

    h_out_ref[...] = jnp.where(m > 0.0, new_h, h)
    c_out_ref[...] = c_new


def _block_diag(blocks):
    """Stack 2-D blocks along the diagonal (done once, at parameter-pack time)."""
    k = len(blocks)
    r, c = blocks[0].shape
    out = jnp.zeros((k * r, k * c), blocks[0].dtype)
    for idx, blk in enumerate(blocks):
        out = out.at[idx * r:(idx + 1) * r, idx * c:(idx + 1) * c].set(blk)
    return out


def pack_params(params, num_kernels):
    """Pack per-kernel, per-gate weights into fused block-diagonal matrices.

    wx : (K*I, 4*K*H)   wh : (K*H, 4*K*H)   b : (1, 4*K*H)
    Output-column layout is gate-major: [forget | input | out | cell], each
    slab K*H wide with per-kernel blocks on its own lanes.
    """
    K = num_kernels

    def bd(name):
        w = params[name].astype(jnp.float32)
        return _block_diag([w[k] for k in range(K)])

    wx = jnp.concatenate([bd("wf"), bd("wi"), bd("wo"), bd("wc")], axis=1)
    wh = jnp.concatenate([bd("uf"), bd("ui"), bd("uo"), bd("uc")], axis=1)
    b = jnp.concatenate([params[n].astype(jnp.float32).reshape(-1)
                         for n in ("bf", "bi", "bo", "bc")]).reshape(1, -1)
    return {"wx": wx, "wh": wh, "b": b}


def lstm_dynamics_forward(hidden, inp, mask, cell, packed):
    """hidden:(B,K,H) inp:(B,K,I,1) mask:(B,K,H) cell:(B,K,H) -> (hidden', cell')."""
    B, K, H = hidden.shape
    I = inp.shape[2]

    # Reshape-only glue (contiguous -> free): lane-dense (B, K*D) slabs.
    x2 = inp.reshape(B, K * I).astype(jnp.float32)        # squeeze(-1) + flatten
    h2 = hidden.reshape(B, K * H).astype(jnp.float32)
    c2 = cell.reshape(B, K * H).astype(jnp.float32)
    m2 = mask.reshape(B, K * H).astype(jnp.float32)

    # Single invocation, no grid: everything (~0.4 MB) lives in VMEM for the
    # whole kernel; default full-array BlockSpecs are used.
    h_out, c_out = pl.pallas_call(
        _lstm_dynamics_kernel,
        out_shape=(jax.ShapeDtypeStruct((B, K * H), jnp.float32),
                   jax.ShapeDtypeStruct((B, K * H), jnp.float32)),
    )(x2, h2, c2, m2, packed["wx"], packed["wh"], packed["b"])

    return h_out.reshape(B, K, H), c_out.reshape(B, K, H)


def _reference(hidden, inp, mask, cell, p):
    """Pure-JAX reference with the original per-kernel parameter layout."""
    x = inp[..., 0]                              # (B, K, I)

    def proj(w, u, b):
        ip = jnp.einsum('bki,kih->bkh', x, w)
        hp = jnp.einsum('bkh,khg->bkg', hidden, u)
        return ip + hp + b[None]

    f = jax.nn.sigmoid(proj(p['wf'], p['uf'], p['bf']))
    i = jax.nn.sigmoid(proj(p['wi'], p['ui'], p['bi']))
    o = jax.nn.sigmoid(proj(p['wo'], p['uo'], p['bo']))
    g = jnp.tanh(proj(p['wc'], p['uc'], p['bc']))
    c_new = f * cell + i * jnp.tanh(g)
    new_h = o * jnp.tanh(c_new)
    return jnp.where(mask > 0, new_h, hidden), c_new


if __name__ == "__main__":
    # small shapes: batch=8, input_dim=16, hidden_dim=32, num_kernels=4
    B, K, I, H = 8, 4, 16, 32
    key = jax.random.PRNGKey(0)
    keys = jax.random.split(key, 12)

    # deterministic parameter init (torch.rand ~ U[0,1); biases zero)
    params = {
        "wf": jax.random.uniform(keys[0], (K, I, H), jnp.float32),
        "uf": jax.random.uniform(keys[1], (K, H, H), jnp.float32),
        "bf": jnp.zeros((K, H), jnp.float32),
        "wi": jax.random.uniform(keys[2], (K, I, H), jnp.float32),
        "ui": jax.random.uniform(keys[3], (K, H, H), jnp.float32),
        "bi": jnp.zeros((K, H), jnp.float32),
        "wo": jax.random.uniform(keys[4], (K, I, H), jnp.float32),
        "uo": jax.random.uniform(keys[5], (K, H, H), jnp.float32),
        "bo": jnp.zeros((K, H), jnp.float32),
        "wc": jax.random.uniform(keys[6], (K, I, H), jnp.float32),
        "uc": jax.random.uniform(keys[7], (K, H, H), jnp.float32),
        "bc": jnp.zeros((K, H), jnp.float32),
    }

    hidden = jax.random.normal(keys[8], (B, K, H), jnp.float32)
    inp = jax.random.normal(keys[9], (B, K, I, 1), jnp.float32)
    mask = (jax.random.uniform(keys[10], (B, K, H)) > 0.5).astype(jnp.float32)
    cell = jnp.zeros((B, K, H), jnp.float32)   # module.reset(batch_size=B)

    # Weights are packed once (outside the per-step forward), like a parameter
    # preprocessing pass.
    packed = jax.tree_util.tree_map(jax.block_until_ready, pack_params(params, K))

    h_new, c_new = lstm_dynamics_forward(hidden, inp, mask, cell, packed)
    jax.block_until_ready((h_new, c_new))

    h_ref, c_ref = _reference(hidden, inp, mask, cell, params)
    assert jnp.allclose(h_new, h_ref, atol=1e-3, rtol=1e-3), "hidden mismatch"
    assert jnp.allclose(c_new, c_ref, atol=1e-3, rtol=1e-3), "cell mismatch"

    print("KERNEL_OK")
</pallas_src>

<mosaic_0001>
module attributes {stable_mosaic.version = 11 : i64} {
  func.func @_lstm_dynamics_kernel(%arg0: memref<8x64xf32, #tpu.memory_space<vmem>>, %arg1: memref<8x128xf32, #tpu.memory_space<vmem>>, %arg2: memref<8x128xf32, #tpu.memory_space<vmem>>, %arg3: memref<8x128xf32, #tpu.memory_space<vmem>>, %arg4: memref<64x512xf32, #tpu.memory_space<vmem>>, %arg5: memref<128x512xf32, #tpu.memory_space<vmem>>, %arg6: memref<1x512xf32, #tpu.memory_space<vmem>>, %arg7: memref<8x128xf32, #tpu.memory_space<vmem>>, %arg8: memref<8x128xf32, #tpu.memory_space<vmem>>) attributes {dimension_semantics = [], scalar_prefetch = 0 : i64, scratch_operands = 0 : i64, tpu.core_type = #tpu.core_type<tc>} {
    %c0 = arith.constant 0 : index
    %c0_0 = arith.constant 0 : index
    %0 = vector.load %arg0[%c0, %c0_0] : memref<8x64xf32, #tpu.memory_space<vmem>>, vector<8x64xf32>
    %c0_1 = arith.constant 0 : index
    %c0_2 = arith.constant 0 : index
    %1 = vector.load %arg1[%c0_1, %c0_2] : memref<8x128xf32, #tpu.memory_space<vmem>>, vector<8x128xf32>
    %c0_3 = arith.constant 0 : index
    %c0_4 = arith.constant 0 : index
    %2 = vector.load %arg2[%c0_3, %c0_4] : memref<8x128xf32, #tpu.memory_space<vmem>>, vector<8x128xf32>
    %c0_5 = arith.constant 0 : index
    %c0_6 = arith.constant 0 : index
    %3 = vector.load %arg3[%c0_5, %c0_6] : memref<8x128xf32, #tpu.memory_space<vmem>>, vector<8x128xf32>
    %c0_7 = arith.constant 0 : index
    %c0_8 = arith.constant 0 : index
    %4 = vector.load %arg4[%c0_7, %c0_8] : memref<64x512xf32, #tpu.memory_space<vmem>>, vector<64x512xf32>
    %cst = arith.constant dense<0.000000e+00> : vector<8x512xf32>
    %5 = tpu.matmul %0, %4, %cst {dimension_numbers = #tpu.dot_dimension_numbers<[1], [0], [0], [1], [0, 0, 1, 1], [], []>} : vector<8x64xf32>, vector<64x512xf32>, vector<8x512xf32> -> vector<8x512xf32>
    %c0_9 = arith.constant 0 : index
    %c0_10 = arith.constant 0 : index
    %6 = vector.load %arg5[%c0_9, %c0_10] : memref<128x512xf32, #tpu.memory_space<vmem>>, vector<128x512xf32>
    %cst_11 = arith.constant dense<0.000000e+00> : vector<8x512xf32>
    %7 = tpu.matmul %1, %6, %cst_11 {dimension_numbers = #tpu.dot_dimension_numbers<[1], [0], [0], [1], [0, 0, 1, 1], [], []>} : vector<8x128xf32>, vector<128x512xf32>, vector<8x512xf32> -> vector<8x512xf32>
    %8 = arith.addf %5, %7 : vector<8x512xf32>
    %c0_12 = arith.constant 0 : index
    %c0_13 = arith.constant 0 : index
    %9 = vector.load %arg6[%c0_12, %c0_13] : memref<1x512xf32, #tpu.memory_space<vmem>>, vector<1x512xf32>
    %10 = vector.broadcast %9 : vector<1x512xf32> to vector<8x512xf32>
    %11 = arith.addf %8, %10 : vector<8x512xf32>
    %12 = vector.extract_strided_slice %11 {offsets = [0, 0], sizes = [8, 128], strides = [1, 1]} : vector<8x512xf32> to vector<8x128xf32>
    %13 = arith.negf %12 : vector<8x128xf32>
    %14 = math.exp %13 : vector<8x128xf32>
    %cst_14 = arith.constant 1.000000e+00 : f32
    %15 = vector.broadcast %cst_14 : f32 to vector<8x128xf32>
    %16 = arith.addf %15, %14 : vector<8x128xf32>
    %17 = arith.divf %15, %16 : vector<8x128xf32>
    %18 = vector.extract_strided_slice %11 {offsets = [0, 128], sizes = [8, 128], strides = [1, 1]} : vector<8x512xf32> to vector<8x128xf32>
    %19 = arith.negf %18 : vector<8x128xf32>
    %20 = math.exp %19 : vector<8x128xf32>
    %cst_15 = arith.constant 1.000000e+00 : f32
    %21 = vector.broadcast %cst_15 : f32 to vector<8x128xf32>
    %22 = arith.addf %21, %20 : vector<8x128xf32>
    %23 = arith.divf %21, %22 : vector<8x128xf32>
    %24 = vector.extract_strided_slice %11 {offsets = [0, 256], sizes = [8, 128], strides = [1, 1]} : vector<8x512xf32> to vector<8x128xf32>
    %25 = arith.negf %24 : vector<8x128xf32>
    %26 = math.exp %25 : vector<8x128xf32>
    %cst_16 = arith.constant 1.000000e+00 : f32
    %27 = vector.broadcast %cst_16 : f32 to vector<8x128xf32>
    %28 = arith.addf %27, %26 : vector<8x128xf32>
    %29 = arith.divf %27, %28 : vector<8x128xf32>
    %30 = vector.extract_strided_slice %11 {offsets = [0, 384], sizes = [8, 128], strides = [1, 1]} : vector<8x512xf32> to vector<8x128xf32>
    %31 = math.tanh %30 : vector<8x128xf32>
    %32 = arith.mulf %17, %2 : vector<8x128xf32>
    %33 = math.tanh %31 : vector<8x128xf32>
    %34 = arith.mulf %23, %33 : vector<8x128xf32>
    %35 = arith.addf %32, %34 : vector<8x128xf32>
    %36 = math.tanh %35 : vector<8x128xf32>
    %37 = arith.mulf %29, %36 : vector<8x128xf32>
    %cst_17 = arith.constant 0.000000e+00 : f32
    %38 = vector.broadcast %cst_17 : f32 to vector<8x128xf32>
    %39 = arith.cmpf ogt, %3, %38 : vector<8x128xf32>
    %40 = arith.select %39, %37, %1 : vector<8x128xi1>, vector<8x128xf32>
    %c0_18 = arith.constant 0 : index
    %c0_19 = arith.constant 0 : index
    %41 = vector.load %arg7[%c0_18, %c0_19] : memref<8x128xf32, #tpu.memory_space<vmem>>, vector<8x128xf32>
    tpu.vector_store %arg7[%c0_18, %c0_19], %40 {strides = array<i32>} : memref<8x128xf32, #tpu.memory_space<vmem>>, vector<8x128xf32>,
    %c0_20 = arith.constant 0 : index
    %c0_21 = arith.constant 0 : index
    %42 = vector.load %arg8[%c0_20, %c0_21] : memref<8x128xf32, #tpu.memory_space<vmem>>, vector<8x128xf32>
    tpu.vector_store %arg8[%c0_20, %c0_21], %35 {strides = array<i32>} : memref<8x128xf32, #tpu.memory_space<vmem>>, vector<8x128xf32>,
    return
  }
}

</mosaic_0001>

<llo_original>
// kernel: tpu_custom_call.1
$region0: #{tpu_custom_call.1}
  #allocation0 [shape = 'u32[]', space=smem, size = 0x4, offset = 0x4, fixed_abs, tag = 'smem constant byte address 0x4 - core index']
  #allocation1 [shape = 'u32[144,128]{1,0:T(1,128)}', space=vmem, size = 0x12000, scoped, tag = 'internal scratch']
  %s0 = inlined_call_operand.hbm [shape: f32[8,64], index: 0, kind: input, shape index: {}]
  %s1 = inlined_call_operand.hbm [shape: f32[8,128], index: 1, kind: input, shape index: {}]
  %s2 = inlined_call_operand.hbm [shape: f32[8,128], index: 2, kind: input, shape index: {}]
  %s3 = inlined_call_operand.vmem [shape: f32[8,128], index: 3, kind: input, shape index: {}]
  %s4 = inlined_call_operand.hbm [shape: f32[64,512], index: 4, kind: input, shape index: {}]
  %s5 = inlined_call_operand.hbm [shape: f32[128,512], index: 5, kind: input, shape index: {}]
  %s6 = inlined_call_operand.vmem [shape: f32[1,512], index: 6, kind: input, shape index: {}]
  %s7 = inlined_call_operand.hbm [shape: f32[8,128], index: 7, kind: output, shape index: {0}]
  %s8 = inlined_call_operand.hbm [shape: f32[8,128], index: 8, kind: output, shape index: {1}]
  %9 = xla_tuple %s7, %s8
  %s10 = sld [smem:[#allocation0]]
  $region66: #{tpu_custom_call.1} parent=0
    _
  %s12 = ssub.s32 1, %s10
  %s13 = scalar_select 0, %s12, %s10
  $region1: #{tpu_custom_call.1} parent=0
    #allocation2 [shape = 'u8[4096]{0}', space=vmem, size = 0x1000, scoped, tag = 'input window, operand 0, single buffered']
    #allocation3 [shape = 's32[1]{0}', space=sflag, size = 0x4, scoped, tag = 'scoped memory for tpu_custom_call.1']
    #allocation4 [shape = 's32[1]{0}', space=sflag, size = 0x4, scoped, tag = 'scoped memory for tpu_custom_call.1']
    #allocation5 [shape = 'u8[4096]{0}', space=vmem, size = 0x1000, scoped, tag = 'input window, operand 1, single buffered']
    #allocation6 [shape = 's32[1]{0}', space=sflag, size = 0x4, scoped, tag = 'scoped memory for tpu_custom_call.1']
    #allocation7 [shape = 'u8[4096]{0}', space=vmem, size = 0x1000, scoped, tag = 'input window, operand 2, single buffered']
    #allocation8 [shape = 'u8[131072]{0}', space=vmem, size = 0x20000, scoped, tag = 'input window, operand 4, single buffered']
    #allocation9 [shape = 's32[1]{0}', space=sflag, size = 0x4, scoped, tag = 'scoped memory for tpu_custom_call.1']
    #allocation10 [shape = 'u8[262144]{0}', space=vmem, size = 0x40000, scoped, tag = 'input window, operand 5, single buffered']
    #allocation11 [shape = 'u8[4096]{0}', space=vmem, size = 0x1000, scoped, tag = 'output window, operand 0, single buffered']
    #allocation12 [shape = 'u8[4096]{0}', space=vmem, size = 0x1000, scoped, tag = 'output window, operand 1, single buffered']
    #allocation13 [shape = 's32[1]{0}', space=sflag, size = 0x4, scoped, tag = 'scoped memory for tpu_custom_call.1']
    %14 = vsyncpa [#allocation3], 0
    %15 = vsyncpa [#allocation6], 0
    %16 = vsyncpa [#allocation9], 0
    %17 = vsyncpa [#allocation4], 0
    %18 = vsyncpa [#allocation13], 0
    // Predicated region
    $region2: #{tpu_custom_call.1} parent=1 // pred_check
      _
    $region3: #{tpu_custom_call.1} parent=1 // pred_check_branch
      %20 = sbr.rel (0) target = $region5
    $region4: #{tpu_custom_call.1} parent=1 // pred_region
      %s22 = ssub.s32 128, 128
      %23 = vsyncadd [#allocation3], %s22
      %s25 = sshll.u32 [#allocation2], 4
      %s26 = int_to_ptr.vmem [resolvable:$true] %s25
      %28 = dma.hbm_to_vmem [thread:$0]  %s0, 128, %s26, [#allocation3]
    $region5: #{tpu_custom_call.1} parent=1 // pred_fallthru
      _
    // Predicated region
    $region6: #{tpu_custom_call.1} parent=1 // pred_check
      _
    $region7: #{tpu_custom_call.1} parent=1 // pred_check_branch
      %30 = sbr.rel (0) target = $region9
    $region8: #{tpu_custom_call.1} parent=1 // pred_region
      %s32 = ssub.s32 128, 128
      %33 = vsyncadd [#allocation6], %s32
      %s35 = sshll.u32 [#allocation5], 4
      %s36 = int_to_ptr.vmem [resolvable:$true] %s35
      %38 = dma.hbm_to_vmem [thread:$0]  %s1, 128, %s36, [#allocation6]
    $region9: #{tpu_custom_call.1} parent=1 // pred_fallthru
      _
    // Predicated region
    $region10: #{tpu_custom_call.1} parent=1 // pred_check
      _
    $region11: #{tpu_custom_call.1} parent=1 // pred_check_branch
      %40 = sbr.rel (0) target = $region13
    $region12: #{tpu_custom_call.1} parent=1 // pred_region
      %s42 = ssub.s32 128, 128
      %43 = vsyncadd [#allocation6], %s42
      %s45 = sshll.u32 [#allocation7], 4
      %s46 = int_to_ptr.vmem [resolvable:$true] %s45
      %48 = dma.hbm_to_vmem [thread:$0]  %s2, 128, %s46, [#allocation6]
    $region13: #{tpu_custom_call.1} parent=1 // pred_fallthru
      _
    // Predicated region
    $region14: #{tpu_custom_call.1} parent=1 // pred_check
      _
    $region15: #{tpu_custom_call.1} parent=1 // pred_check_branch
      %50 = sbr.rel (0) target = $region17
    $region16: #{tpu_custom_call.1} parent=1 // pred_region
      _
    $region17: #{tpu_custom_call.1} parent=1 // pred_fallthru
      _
    // Predicated region
    $region18: #{tpu_custom_call.1} parent=1 // pred_check
      _
    $region19: #{tpu_custom_call.1} parent=1 // pred_check_branch
      %52 = sbr.rel (0) target = $region21
    $region20: #{tpu_custom_call.1} parent=1 // pred_region
      %s54 = ssub.s32 4096, 4096
      %55 = vsyncadd [#allocation9], %s54
      %s56 = sshll.u32 [#allocation8], 4
      %s57 = int_to_ptr.vmem [resolvable:$true] %s56
      %62 = dma.hbm_to_vmem [thread:$0]  %s4, 4096, %s57, [#allocation9], 512, 512, 32
    $region21: #{tpu_custom_call.1} parent=1 // pred_fallthru
      _
    // Predicated region
    $region22: #{tpu_custom_call.1} parent=1 // pred_check
      _
    $region23: #{tpu_custom_call.1} parent=1 // pred_check_branch
      %64 = sbr.rel (0) target = $region25
    $region24: #{tpu_custom_call.1} parent=1 // pred_region
      %s66 = ssub.s32 8192, 8192
      %67 = vsyncadd [#allocation9], %s66
      %s68 = sshll.u32 [#allocation10], 4
      %s69 = int_to_ptr.vmem [resolvable:$true] %s68
      %74 = dma.hbm_to_vmem [thread:$0]  %s5, 8192, %s69, [#allocation9], 512, 512, 32
    $region25: #{tpu_custom_call.1} parent=1 // pred_fallthru
      _
    // Predicated region
    $region26: #{tpu_custom_call.1} parent=1 // pred_check
      _
    $region27: #{tpu_custom_call.1} parent=1 // pred_check_branch
      %76 = sbr.rel (0) target = $region29
    $region28: #{tpu_custom_call.1} parent=1 // pred_region
      _
    $region29: #{tpu_custom_call.1} parent=1 // pred_fallthru
      _
    // Predicated region
    $region30: #{tpu_custom_call.1} parent=1 // pred_check
      _
    $region31: #{tpu_custom_call.1} parent=1 // pred_check_branch
      %78 = sbr.rel (0) target = $region33
    $region32: #{tpu_custom_call.1} parent=1 // pred_region
      %79 = dma.done [#allocation3], 128
    $region33: #{tpu_custom_call.1} parent=1 // pred_fallthru
      _
    // Predicated region
    $region34: #{tpu_custom_call.1} parent=1 // pred_check
      _
    $region35: #{tpu_custom_call.1} parent=1 // pred_check_branch
      %81 = sbr.rel (0) target = $region37
    $region36: #{tpu_custom_call.1} parent=1 // pred_region
      %82 = dma.done [#allocation6], 128
    $region37: #{tpu_custom_call.1} parent=1 // pred_fallthru
      _
    // Predicated region
    $region38: #{tpu_custom_call.1} parent=1 // pred_check
      _
    $region39: #{tpu_custom_call.1} parent=1 // pred_check_branch
      %84 = sbr.rel (0) target = $region41
    $region40: #{tpu_custom_call.1} parent=1 // pred_region
      %85 = dma.done [#allocation6], 128
    $region41: #{tpu_custom_call.1} parent=1 // pred_fallthru
      _
    // Predicated region
    $region42: #{tpu_custom_call.1} parent=1 // pred_check
      _
    $region43: #{tpu_custom_call.1} parent=1 // pred_check_branch
      %87 = sbr.rel (0) target = $region45
    $region44: #{tpu_custom_call.1} parent=1 // pred_region
      %88 = dma.done [#allocation9], 4096
    $region45: #{tpu_custom_call.1} parent=1 // pred_fallthru
      _
    // Predicated region
    $region46: #{tpu_custom_call.1} parent=1 // pred_check
      _
    $region47: #{tpu_custom_call.1} parent=1 // pred_check_branch
      %90 = sbr.rel (0) target = $region49
    $region48: #{tpu_custom_call.1} parent=1 // pred_region
      %91 = dma.done [#allocation9], 8192
    $region49: #{tpu_custom_call.1} parent=1 // pred_fallthru
      _
    %v92 = vld [vmem:[#allocation2] sm:$0xff]
    %v93 = vld [vmem:[#allocation5] sm:$0xff]
    %v94 = vld [vmem:[#allocation7] sm:$0xff]
    %v95 = vld [vmem:[%s3] sm:$0xff]
    %v96 = vld [vmem:[#allocation8] sm:$0xff]
    %v97 = vld [vmem:[#allocation8 + $0x8] sm:$0xff]
    %v98 = vld [vmem:[#allocation8 + $0x10] sm:$0xff]
    %v99 = vld [vmem:[#allocation8 + $0x18] sm:$0xff]
    %v100 = vld [vmem:[#allocation8 + $0x20] sm:$0xff]
    %v101 = vld [vmem:[#allocation8 + $0x28] sm:$0xff]
    %v102 = vld [vmem:[#allocation8 + $0x30] sm:$0xff]
    %v103 = vld [vmem:[#allocation8 + $0x38] sm:$0xff]
    %v104 = vld [vmem:[#allocation8 + $0x40] sm:$0xff]
    %v105 = vld [vmem:[#allocation8 + $0x48] sm:$0xff]
    %v106 = vld [vmem:[#allocation8 + $0x50] sm:$0xff]
    %v107 = vld [vmem:[#allocation8 + $0x58] sm:$0xff]
    %v108 = vld [vmem:[#allocation8 + $0x60] sm:$0xff]
    %v109 = vld [vmem:[#allocation8 + $0x68] sm:$0xff]
    %v110 = vld [vmem:[#allocation8 + $0x70] sm:$0xff]
    %v111 = vld [vmem:[#allocation8 + $0x78] sm:$0xff]
    %v112 = vld [vmem:[#allocation8 + $0x80] sm:$0xff]
    %v113 = vld [vmem:[#allocation8 + $0x88] sm:$0xff]
    %v114 = vld [vmem:[#allocation8 + $0x90] sm:$0xff]
    %v115 = vld [vmem:[#allocation8 + $0x98] sm:$0xff]
    %v116 = vld [vmem:[#allocation8 + $0xa0] sm:$0xff]
    %v117 = vld [vmem:[#allocation8 + $0xa8] sm:$0xff]
    %v118 = vld [vmem:[#allocation8 + $0xb0] sm:$0xff]
    %v119 = vld [vmem:[#allocation8 + $0xb8] sm:$0xff]
    %v120 = vld [vmem:[#allocation8 + $0xc0] sm:$0xff]
    %v121 = vld [vmem:[#allocation8 + $0xc8] sm:$0xff]
    %v122 = vld [vmem:[#allocation8 + $0xd0] sm:$0xff]
    %v123 = vld [vmem:[#allocation8 + $0xd8] sm:$0xff]
    %v124 = vld [vmem:[#allocation8 + $0xe0] sm:$0xff]
    %v125 = vld [vmem:[#allocation8 + $0xe8] sm:$0xff]
    %v126 = vld [vmem:[#allocation8 + $0xf0] sm:$0xff]
    %v127 = vld [vmem:[#allocation8 + $0xf8] sm:$0xff]
    %v128 = vld [vmem:[#allocation10] sm:$0xff]
    %v129 = vld [vmem:[#allocation10 + $0x8] sm:$0xff]
    %v130 = vld [vmem:[#allocation10 + $0x10] sm:$0xff]
    %v131 = vld [vmem:[#allocation10 + $0x18] sm:$0xff]
    %v132 = vld [vmem:[#allocation10 + $0x20] sm:$0xff]
    %v133 = vld [vmem:[#allocation10 + $0x28] sm:$0xff]
    %v134 = vld [vmem:[#allocation10 + $0x30] sm:$0xff]
    %v135 = vld [vmem:[#allocation10 + $0x38] sm:$0xff]
    %v136 = vld [vmem:[#allocation10 + $0x40] sm:$0xff]
    %v137 = vld [vmem:[#allocation10 + $0x48] sm:$0xff]
    %v138 = vld [vmem:[#allocation10 + $0x50] sm:$0xff]
    %v139 = vld [vmem:[#allocation10 + $0x58] sm:$0xff]
    %v140 = vld [vmem:[#allocation10 + $0x60] sm:$0xff]
    %v141 = vld [vmem:[#allocation10 + $0x68] sm:$0xff]
    %v142 = vld [vmem:[#allocation10 + $0x70] sm:$0xff]
    %v143 = vld [vmem:[#allocation10 + $0x78] sm:$0xff]
    %v144 = vld [vmem:[#allocation10 + $0x80] sm:$0xff]
    %v145 = vld [vmem:[#allocation10 + $0x88] sm:$0xff]
    %v146 = vld [vmem:[#allocation10 + $0x90] sm:$0xff]
    %v147 = vld [vmem:[#allocation10 + $0x98] sm:$0xff]
    %v148 = vld [vmem:[#allocation10 + $0xa0] sm:$0xff]
    %v149 = vld [vmem:[#allocation10 + $0xa8] sm:$0xff]
    %v150 = vld [vmem:[#allocation10 + $0xb0] sm:$0xff]
    %v151 = vld [vmem:[#allocation10 + $0xb8] sm:$0xff]
    %v152 = vld [vmem:[#allocation10 + $0xc0] sm:$0xff]
    %v153 = vld [vmem:[#allocation10 + $0xc8] sm:$0xff]
    %v154 = vld [vmem:[#allocation10 + $0xd0] sm:$0xff]
    %v155 = vld [vmem:[#allocation10 + $0xd8] sm:$0xff]
    %v156 = vld [vmem:[#allocation10 + $0xe0] sm:$0xff]
    %v157 = vld [vmem:[#allocation10 + $0xe8] sm:$0xff]
    %v158 = vld [vmem:[#allocation10 + $0xf0] sm:$0xff]
    %v159 = vld [vmem:[#allocation10 + $0xf8] sm:$0xff]
    %v160 = vld [vmem:[#allocation10 + $0x100] sm:$0xff]
    %v161 = vld [vmem:[#allocation10 + $0x108] sm:$0xff]
    %v162 = vld [vmem:[#allocation10 + $0x110] sm:$0xff]
    %v163 = vld [vmem:[#allocation10 + $0x118] sm:$0xff]
    %v164 = vld [vmem:[#allocation10 + $0x120] sm:$0xff]
    %v165 = vld [vmem:[#allocation10 + $0x128] sm:$0xff]
    %v166 = vld [vmem:[#allocation10 + $0x130] sm:$0xff]
    %v167 = vld [vmem:[#allocation10 + $0x138] sm:$0xff]
    %v168 = vld [vmem:[#allocation10 + $0x140] sm:$0xff]
    %v169 = vld [vmem:[#allocation10 + $0x148] sm:$0xff]
    %v170 = vld [vmem:[#allocation10 + $0x150] sm:$0xff]
    %v171 = vld [vmem:[#allocation10 + $0x158] sm:$0xff]
    %v172 = vld [vmem:[#allocation10 + $0x160] sm:$0xff]
    %v173 = vld [vmem:[#allocation10 + $0x168] sm:$0xff]
    %v174 = vld [vmem:[#allocation10 + $0x170] sm:$0xff]
    %v175 = vld [vmem:[#allocation10 + $0x178] sm:$0xff]
    %v176 = vld [vmem:[#allocation10 + $0x180] sm:$0xff]
    %v177 = vld [vmem:[#allocation10 + $0x188] sm:$0xff]
    %v178 = vld [vmem:[#allocation10 + $0x190] sm:$0xff]
    %v179 = vld [vmem:[#allocation10 + $0x198] sm:$0xff]
    %v180 = vld [vmem:[#allocation10 + $0x1a0] sm:$0xff]
    %v181 = vld [vmem:[#allocation10 + $0x1a8] sm:$0xff]
    %v182 = vld [vmem:[#allocation10 + $0x1b0] sm:$0xff]
    %v183 = vld [vmem:[#allocation10 + $0x1b8] sm:$0xff]
    %v184 = vld [vmem:[#allocation10 + $0x1c0] sm:$0xff]
    %v185 = vld [vmem:[#allocation10 + $0x1c8] sm:$0xff]
    %v186 = vld [vmem:[#allocation10 + $0x1d0] sm:$0xff]
    %v187 = vld [vmem:[#allocation10 + $0x1d8] sm:$0xff]
    %v188 = vld [vmem:[#allocation10 + $0x1e0] sm:$0xff]
    %v189 = vld [vmem:[#allocation10 + $0x1e8] sm:$0xff]
    %v190 = vld [vmem:[#allocation10 + $0x1f0] sm:$0xff]
    %v191 = vld [vmem:[#allocation10 + $0x1f8] sm:$0xff]
    %192 = vmatprep.subr.mxu0 %v129
    %193 = vmatpush1.msra.mxu0 %v128
    %194 = vmatprep.subr.mxu0 %v133
    %195 = vmatpush1.msra.mxu0 %v132
    %196 = vmatprep.subr.mxu0 %v137
    %197 = vmatpush1.msra.mxu0 %v136
    %198 = vmatprep.subr.mxu0 %v141
    %199 = vmatpush1.msra.mxu0 %v140
    %200 = vmatprep.subr.mxu0 %v145
    %201 = vmatpush1.msra.mxu0 %v144
    %202 = vmatprep.subr.mxu0 %v149
    %203 = vmatpush1.msra.mxu0 %v148
    %204 = vmatprep.subr.mxu0 %v153
    %205 = vmatpush1.msra.mxu0 %v152
    %206 = vmatprep.subr.mxu0 %v157
    %207 = vmatpush1.msra.mxu0 %v156
    %208 = vmatprep.subr.mxu0 %v161
    %209 = vmatpush1.msra.mxu0 %v160
    %210 = vmatprep.subr.mxu0 %v165
    %211 = vmatpush1.msra.mxu0 %v164
    %212 = vmatprep.subr.mxu0 %v169
    %213 = vmatpush1.msra.mxu0 %v168
    %214 = vmatprep.subr.mxu0 %v173
    %215 = vmatpush1.msra.mxu0 %v172
    %216 = vmatprep.subr.mxu0 %v177
    %217 = vmatpush1.msra.mxu0 %v176
    %218 = vmatprep.subr.mxu0 %v181
    %219 = vmatpush1.msra.mxu0 %v180
    %220 = vmatprep.subr.mxu0 %v185
    %221 = vmatpush1.msra.mxu0 %v184
    %222 = vmatprep.subr.mxu0 %v189
    %223 = vmatpush1.msra.mxu0 %v188
    %224 = vmatprep.subr.mxu0 0.0
    %225 = vmatpush1.msra.mxu0 0.0
    %226 = vmatprep.subr.mxu0 0.0
    %227 = vmatpush1.msra.mxu0 0.0
    %228 = vmatprep.subr.mxu0 0.0
    %229 = vmatpush1.msra.mxu0 0.0
    %230 = vmatprep.subr.mxu0 0.0
    %231 = vmatpush1.msra.mxu0 0.0
    %232 = vmatprep.subr.mxu0 0.0
    %233 = vmatpush1.msra.mxu0 0.0
    %234 = vmatprep.subr.mxu0 0.0
    %235 = vmatpush1.msra.mxu0 0.0
    %236 = vmatprep.subr.mxu0 0.0
    %237 = vmatpush1.msra.mxu0 0.0
    %238 = vmatprep.subr.mxu0 0.0
    %239 = vmatpush1.msra.mxu0 0.0
    %240 = vmatprep.subr.mxu0 0.0
    %241 = vmatpush1.msra.mxu0 0.0
    %242 = vmatprep.subr.mxu0 0.0
    %243 = vmatpush1.msra.mxu0 0.0
    %244 = vmatprep.subr.mxu0 0.0
    %245 = vmatpush1.msra.mxu0 0.0
    %246 = vmatprep.subr.mxu0 0.0
    %247 = vmatpush1.msra.mxu0 0.0
    %248 = vmatprep.subr.mxu0 0.0
    %249 = vmatpush1.msra.mxu0 0.0
    %250 = vmatprep.subr.mxu0 0.0
    %251 = vmatpush1.msra.mxu0 0.0
    %252 = vmatprep.subr.mxu0 0.0
    %253 = vmatpush1.msra.mxu0 0.0
    %254 = vmatprep.subr.mxu0 0.0
    %255 = vmatpush1.msra.mxu0 0.0
    %256 = vmatprep.mubr.f32.mxu0 0.0
    %257 = vmatmul.mubr.f32.gmra.mrb[0].mxu0 %v93
    %v258 = vpop.f32.mrb[0].mxu0
    %v259 = vadd.f32 0.0, %v258
    %v260 = vpop.f32.mrb[0].mxu0
    %v261 = vadd.f32 0.0, %v260
    %262 = vdwg.mxu0
    %263 = vmatprep.subr.mxu0 %v131
    %264 = vmatpush1.msra.mxu0 %v130
    %265 = vmatprep.subr.mxu0 %v135
    %266 = vmatpush1.msra.mxu0 %v134
    %267 = vmatprep.subr.mxu0 %v139
    %268 = vmatpush1.msra.mxu0 %v138
    %269 = vmatprep.subr.mxu0 %v143
    %270 = vmatpush1.msra.mxu0 %v142
    %271 = vmatprep.subr.mxu0 %v147
    %272 = vmatpush1.msra.mxu0 %v146
    %273 = vmatprep.subr.mxu0 %v151
    %274 = vmatpush1.msra.mxu0 %v150
    %275 = vmatprep.subr.mxu0 %v155
    %276 = vmatpush1.msra.mxu0 %v154
    %277 = vmatprep.subr.mxu0 %v159
    %278 = vmatpush1.msra.mxu0 %v158
    %279 = vmatprep.subr.mxu0 %v163
    %280 = vmatpush1.msra.mxu0 %v162
    %281 = vmatprep.subr.mxu0 %v167
    %282 = vmatpush1.msra.mxu0 %v166
    %283 = vmatprep.subr.mxu0 %v171
    %284 = vmatpush1.msra.mxu0 %v170
    %285 = vmatprep.subr.mxu0 %v175
    %286 = vmatpush1.msra.mxu0 %v174
    %287 = vmatprep.subr.mxu0 %v179
    %288 = vmatpush1.msra.mxu0 %v178
    %289 = vmatprep.subr.mxu0 %v183
    %290 = vmatpush1.msra.mxu0 %v182
    %291 = vmatprep.subr.mxu0 %v187
    %292 = vmatpush1.msra.mxu0 %v186
    %293 = vmatprep.subr.mxu0 %v191
    %294 = vmatpush1.msra.mxu0 %v190
    %295 = vmatprep.subr.mxu0 0.0
    %296 = vmatpush1.msra.mxu0 0.0
    %297 = vmatprep.subr.mxu0 0.0
    %298 = vmatpush1.msra.mxu0 0.0
    %299 = vmatprep.subr.mxu0 0.0
    %300 = vmatpush1.msra.mxu0 0.0
    %301 = vmatprep.subr.mxu0 0.0
    %302 = vmatpush1.msra.mxu0 0.0
    %303 = vmatprep.subr.mxu0 0.0
    %304 = vmatpush1.msra.mxu0 0.0
    %305 = vmatprep.subr.mxu0 0.0
    %306 = vmatpush1.msra.mxu0 0.0
    %307 = vmatprep.subr.mxu0 0.0
    %308 = vmatpush1.msra.mxu0 0.0
    %309 = vmatprep.subr.mxu0 0.0
    %310 = vmatpush1.msra.mxu0 0.0
    %311 = vmatprep.subr.mxu0 0.0
    %312 = vmatpush1.msra.mxu0 0.0
    %313 = vmatprep.subr.mxu0 0.0
    %314 = vmatpush1.msra.mxu0 0.0
    %315 = vmatprep.subr.mxu0 0.0
    %316 = vmatpush1.msra.mxu0 0.0
    %317 = vmatprep.subr.mxu0 0.0
    %318 = vmatpush1.msra.mxu0 0.0
    %319 = vmatprep.subr.mxu0 0.0
    %320 = vmatpush1.msra.mxu0 0.0
    %321 = vmatprep.subr.mxu0 0.0
    %322 = vmatpush1.msra.mxu0 0.0
    %323 = vmatprep.subr.mxu0 0.0
    %324 = vmatpush1.msra.mxu0 0.0
    %325 = vmatprep.subr.mxu0 0.0
    %326 = vmatpush1.msra.mxu0 0.0
    %327 = vmatprep.mubr.f32.mxu0 0.0
    %328 = vmatmul.mubr.f32.gmra.mrb[0].mxu0 %v93
    %v329 = vpop.f32.mrb[0].mxu0
    %v330 = vadd.f32 0.0, %v329
    %v331 = vpop.f32.mrb[0].mxu0
    %v332 = vadd.f32 0.0, %v331
    %333 = vdwg.mxu0
    %vm334 = vcmask 523264
    %v336 = vsel %vm334, %v92, 0
    %338 = vmatprep.subr.mxu0 %v97
    %339 = vmatpush1.msra.mxu0 %v96
    %340 = vmatprep.subr.mxu0 %v101
    %341 = vmatpush1.msra.mxu0 %v100
    %342 = vmatprep.subr.mxu0 %v105
    %343 = vmatpush1.msra.mxu0 %v104
    %344 = vmatprep.subr.mxu0 %v109
    %345 = vmatpush1.msra.mxu0 %v108
    %346 = vmatprep.subr.mxu0 %v113
    %347 = vmatpush1.msra.mxu0 %v112
    %348 = vmatprep.subr.mxu0 %v117
    %349 = vmatpush1.msra.mxu0 %v116
    %350 = vmatprep.subr.mxu0 %v121
    %351 = vmatpush1.msra.mxu0 %v120
    %352 = vmatprep.subr.mxu0 %v125
    %353 = vmatpush1.msra.mxu0 %v124
    %354 = vmatprep.subr.mxu0 0.0
    %355 = vmatpush1.msra.mxu0 0.0
    %356 = vmatprep.subr.mxu0 0.0
    %357 = vmatpush1.msra.mxu0 0.0
    %358 = vmatprep.subr.mxu0 0.0
    %359 = vmatpush1.msra.mxu0 0.0
    %360 = vmatprep.subr.mxu0 0.0
    %361 = vmatpush1.msra.mxu0 0.0
    %362 = vmatprep.subr.mxu0 0.0
    %363 = vmatpush1.msra.mxu0 0.0
    %364 = vmatprep.subr.mxu0 0.0
    %365 = vmatpush1.msra.mxu0 0.0
    %366 = vmatprep.subr.mxu0 0.0
    %367 = vmatpush1.msra.mxu0 0.0
    %368 = vmatprep.subr.mxu0 0.0
    %369 = vmatpush1.msra.mxu0 0.0
    %370 = vmatprep.subr.mxu0 0.0
    %371 = vmatpush1.msra.mxu0 0.0
    %372 = vmatprep.subr.mxu0 0.0
    %373 = vmatpush1.msra.mxu0 0.0
    %374 = vmatprep.subr.mxu0 0.0
    %375 = vmatpush1.msra.mxu0 0.0
    %376 = vmatprep.subr.mxu0 0.0
    %377 = vmatpush1.msra.mxu0 0.0
    %378 = vmatprep.subr.mxu0 0.0
    %379 = vmatpush1.msra.mxu0 0.0
    %380 = vmatprep.subr.mxu0 0.0
    %381 = vmatpush1.msra.mxu0 0.0
    %382 = vmatprep.subr.mxu0 0.0
    %383 = vmatpush1.msra.mxu0 0.0
    %384 = vmatprep.subr.mxu0 0.0
    %385 = vmatpush1.msra.mxu0 0.0
    %386 = vmatprep.subr.mxu0 0.0
    %387 = vmatpush1.msra.mxu0 0.0
    %388 = vmatprep.subr.mxu0 0.0
    %389 = vmatpush1.msra.mxu0 0.0
    %390 = vmatprep.subr.mxu0 0.0
    %391 = vmatpush1.msra.mxu0 0.0
    %392 = vmatprep.subr.mxu0 0.0
    %393 = vmatpush1.msra.mxu0 0.0
    %394 = vmatprep.subr.mxu0 0.0
    %395 = vmatpush1.msra.mxu0 0.0
    %396 = vmatprep.subr.mxu0 0.0
    %397 = vmatpush1.msra.mxu0 0.0
    %398 = vmatprep.subr.mxu0 0.0
    %399 = vmatpush1.msra.mxu0 0.0
    %400 = vmatprep.subr.mxu0 0.0
    %401 = vmatpush1.msra.mxu0 0.0
    %402 = vmatprep.mubr.f32.mxu0 0.0
    %403 = vmatmul.mubr.f32.gmra.mrb[0].mxu0 %v336
    %v404 = vpop.f32.mrb[0].mxu0
    %v405 = vadd.f32 %v259, %v404
    %v406 = vpop.f32.mrb[0].mxu0
    %v407 = vadd.f32 %v261, %v406
    %408 = vdwg.mxu0
    %409 = vmatprep.subr.mxu0 %v99
    %410 = vmatpush1.msra.mxu0 %v98
    %411 = vmatprep.subr.mxu0 %v103
    %412 = vmatpush1.msra.mxu0 %v102
    %413 = vmatprep.subr.mxu0 %v107
    %414 = vmatpush1.msra.mxu0 %v106
    %415 = vmatprep.subr.mxu0 %v111
    %416 = vmatpush1.msra.mxu0 %v110
    %417 = vmatprep.subr.mxu0 %v115
    %418 = vmatpush1.msra.mxu0 %v114
    %419 = vmatprep.subr.mxu0 %v119
    %420 = vmatpush1.msra.mxu0 %v118
    %421 = vmatprep.subr.mxu0 %v123
    %422 = vmatpush1.msra.mxu0 %v122
    %423 = vmatprep.subr.mxu0 %v127
    %424 = vmatpush1.msra.mxu0 %v126
    %425 = vmatprep.subr.mxu0 0.0
    %426 = vmatpush1.msra.mxu0 0.0
    %427 = vmatprep.subr.mxu0 0.0
    %428 = vmatpush1.msra.mxu0 0.0
    %429 = vmatprep.subr.mxu0 0.0
    %430 = vmatpush1.msra.mxu0 0.0
    %431 = vmatprep.subr.mxu0 0.0
    %432 = vmatpush1.msra.mxu0 0.0
    %433 = vmatprep.subr.mxu0 0.0
    %434 = vmatpush1.msra.mxu0 0.0
    %435 = vmatprep.subr.mxu0 0.0
    %436 = vmatpush1.msra.mxu0 0.0
    %437 = vmatprep.subr.mxu0 0.0
    %438 = vmatpush1.msra.mxu0 0.0
    %439 = vmatprep.subr.mxu0 0.0
    %440 = vmatpush1.msra.mxu0 0.0
    %441 = vmatprep.subr.mxu0 0.0
    %442 = vmatpush1.msra.mxu0 0.0
    %443 = vmatprep.subr.mxu0 0.0
    %444 = vmatpush1.msra.mxu0 0.0
    %445 = vmatprep.subr.mxu0 0.0
    %446 = vmatpush1.msra.mxu0 0.0
    %447 = vmatprep.subr.mxu0 0.0
    %448 = vmatpush1.msra.mxu0 0.0
    %449 = vmatprep.subr.mxu0 0.0
    %450 = vmatpush1.msra.mxu0 0.0
    %451 = vmatprep.subr.mxu0 0.0
    %452 = vmatpush1.msra.mxu0 0.0
    %453 = vmatprep.subr.mxu0 0.0
    %454 = vmatpush1.msra.mxu0 0.0
    %455 = vmatprep.subr.mxu0 0.0
    %456 = vmatpush1.msra.mxu0 0.0
    %457 = vmatprep.subr.mxu0 0.0
    %458 = vmatpush1.msra.mxu0 0.0
    %459 = vmatprep.subr.mxu0 0.0
    %460 = vmatpush1.msra.mxu0 0.0
    %461 = vmatprep.subr.mxu0 0.0
    %462 = vmatpush1.msra.mxu0 0.0
    %463 = vmatprep.subr.mxu0 0.0
    %464 = vmatpush1.msra.mxu0 0.0
    %465 = vmatprep.subr.mxu0 0.0
    %466 = vmatpush1.msra.mxu0 0.0
    %467 = vmatprep.subr.mxu0 0.0
    %468 = vmatpush1.msra.mxu0 0.0
    %469 = vmatprep.subr.mxu0 0.0
    %470 = vmatpush1.msra.mxu0 0.0
    %471 = vmatprep.subr.mxu0 0.0
    %472 = vmatpush1.msra.mxu0 0.0
    %473 = vmatprep.mubr.f32.mxu0 0.0
    %474 = vmatmul.mubr.f32.gmra.mrb[0].mxu0 %v336
    %v475 = vpop.f32.mrb[0].mxu0
    %v476 = vadd.f32 %v330, %v475
    %v477 = vpop.f32.mrb[0].mxu0
    %v478 = vadd.f32 %v332, %v477
    %479 = vdwg.mxu0
    %v480 = vld [vmem:[%s6] sm:$0xf]
    %v482 = vlaneseq
    %v483 = vshrl.u32 %v482, 7
    %v484 = vsub.s32 0, %v483
    %v485 = vrot.slane %v480, %v484
    %v486 = vlaneseq
    %v487 = vshrl.u32 %v486, 7
    %v488 = vsub.s32 1, %v487
    %v489 = vrot.slane %v480, %v488
    %v490 = vlaneseq
    %v491 = vshrl.u32 %v490, 7
    %v492 = vsub.s32 2, %v491
    %v493 = vrot.slane %v480, %v492
    %v494 = vlaneseq
    %v495 = vshrl.u32 %v494, 7
    %v496 = vsub.s32 3, %v495
    %v497 = vrot.slane %v480, %v496
    %v502 = vadd.f32 %v405, %v485
    %v503 = vadd.f32 %v407, %v489
    %v504 = vadd.f32 %v476, %v493
    %v505 = vadd.f32 %v478, %v497
    %v506 = vxor.u32 %v502, 2147483648
    %v507 = vmul.f32 %v506, 1.442695
    %v508 = vpow.pop %v507
    %v509 = vadd.f32 %v508, 1.0
    %v510 = vrcp.pop %v509
    %v511 = vmul.f32 1.0, %v510
    %v512 = vxor.u32 %v503, 2147483648
    %v513 = vmul.f32 %v512, 1.442695
    %v514 = vpow.pop %v513
    %v515 = vadd.f32 %v514, 1.0
    %v516 = vrcp.pop %v515
    %v517 = vmul.f32 1.0, %v516
    %v518 = vxor.u32 %v504, 2147483648
    %v519 = vmul.f32 %v518, 1.442695
    %v520 = vpow.pop %v519
    %v521 = vadd.f32 %v520, 1.0
    %v522 = vrcp.pop %v521
    %v523 = vmul.f32 1.0, %v522
    %v524 = vtanh.pop %v505
    %v525 = vmul.f32 %v511, %v94
    %v526 = vtanh.pop %v524
    %v527 = vmul.f32 %v517, %v526
    %v528 = vadd.f32 %v525, %v527
    %v529 = vtanh.pop %v528
    %v530 = vmul.f32 %v523, %v529
    %vm531 = vcmp.gt.f32.partialorder %v95, 0.0
    %v532 = vsel %vm531, %v530, %v93
    %533 = vst [vmem:[#allocation11] sm:$0xff] %v532
    %534 = vst [vmem:[#allocation12] sm:$0xff] %v528
    // Predicated region
    $region50: #{tpu_custom_call.1} parent=1 // pred_check
      _
    $region51: #{tpu_custom_call.1} parent=1 // pred_check_branch
      %536 = sbr.rel (0) target = $region53
    $region52: #{tpu_custom_call.1} parent=1 // pred_region
      %s538 = ssub.s32 128, 128
      %539 = vsyncadd [#allocation4], %s538
      %s541 = sshll.u32 [#allocation11], 4
      %s542 = int_to_ptr.vmem [resolvable:$true] %s541
      %544 = dma.vmem_to_hbm [thread:$0]  %s542, 128, %s7, [#allocation4]
    $region53: #{tpu_custom_call.1} parent=1 // pred_fallthru
      _
    // Predicated region
    $region54: #{tpu_custom_call.1} parent=1 // pred_check
      _
    $region55: #{tpu_custom_call.1} parent=1 // pred_check_branch
      %546 = sbr.rel (0) target = $region57
    $region56: #{tpu_custom_call.1} parent=1 // pred_region
      %s548 = ssub.s32 128, 128
      %549 = vsyncadd [#allocation13], %s548
      %s551 = sshll.u32 [#allocation12], 4
      %s552 = int_to_ptr.vmem [resolvable:$true] %s551
      %554 = dma.vmem_to_hbm [thread:$0]  %s552, 128, %s8, [#allocation13]
    $region57: #{tpu_custom_call.1} parent=1 // pred_fallthru
      _
    // Predicated region
    $region58: #{tpu_custom_call.1} parent=1 // pred_check
      _
    $region59: #{tpu_custom_call.1} parent=1 // pred_check_branch
      %556 = sbr.rel (0) target = $region61
    $region60: #{tpu_custom_call.1} parent=1 // pred_region
      %557 = dma.done [#allocation4], 128
    $region61: #{tpu_custom_call.1} parent=1 // pred_fallthru
      _
    // Predicated region
    $region62: #{tpu_custom_call.1} parent=1 // pred_check
      _
    $region63: #{tpu_custom_call.1} parent=1 // pred_check_branch
      %559 = sbr.rel (0) target = $region65
    $region64: #{tpu_custom_call.1} parent=1 // pred_region
      %560 = dma.done [#allocation13], 128
    $region65: #{tpu_custom_call.1} parent=1 // pred_fallthru
      _
    %561 = vsyncpa [#allocation3], 1
    %562 = vsyncpa [#allocation6], 1
    %563 = vsyncpa [#allocation9], 1
    %564 = vsyncpa [#allocation4], 1
    %565 = vsyncpa [#allocation13], 1

</llo_original>
